<compile_context>
chip_gen: v6e
topology: v6e:2x2x1
jax: 0.10.0
libtpu: 0.0.40
codegen_flags: <defaults>
</compile_context>

<pallas_src>
import functools

import jax
import jax.numpy as jnp
from jax.experimental import pallas as pl
from jax.experimental.pallas import tpu as pltpu

BN_EPS = 1e-5
LANES = 128
NEG_BIG = -1e30
TB_DEFAULT = 1024                       # batch-tile rows (multiple of 256)
VMEM_LIMIT = 48 * 1024 * 1024           # v7x-safe, lifts v5e's 16 MiB default

_CPARAMS = pltpu.CompilerParams(
    dimension_semantics=("parallel",),  # batch tiles are fully independent
    vmem_limit_bytes=VMEM_LIMIT)


def _round_up(n, m):
    return (n + m - 1) // m * m


def _pad2(a, rows, cols):
    return jnp.pad(a, ((0, rows - a.shape[0]), (0, cols - a.shape[1])))


# ---------------------------------------------------------------------------
# Kernels
# ---------------------------------------------------------------------------

def _tile_stats(h, tile_idx, tb, b_total):
    """One-pass per-tile (sum, sum_sq) over valid rows, packed as (8, 128)."""
    if b_total % tb != 0:  # mask zero-padded rows of a partial last tile
        valid = jnp.minimum(b_total - tile_idx * tb, tb)
        row = jax.lax.broadcasted_iota(jnp.int32, (tb, 1), 0)
        h = jnp.where(row < valid, h, 0.0)
    s = jnp.sum(h, axis=0, keepdims=True)
    ss = jnp.sum(h * h, axis=0, keepdims=True)
    return jnp.concatenate([s, ss, jnp.zeros((6, LANES), jnp.float32)], axis=0)


def fc_stats_kernel(x_ref, w_ref, h_ref, st_ref, *, tb, b_total):
    """h = x @ w (bf16 MXU, f32 acc); emit per-tile BN partial stats."""
    i = pl.program_id(0)
    h = jnp.dot(x_ref[...], w_ref[...], preferred_element_type=jnp.float32)
    h_ref[...] = h
    st_ref[0] = _tile_stats(h, i, tb, b_total)


def bn_relu_fc_stats_kernel(hin_ref, aff_ref, w_ref, h_ref, st_ref, *,
                            tb, b_total):
    """h = relu(hin*scale + shift) @ w; emit per-tile BN partial stats."""
    i = pl.program_id(0)
    scale = aff_ref[0:1, :]
    shift = aff_ref[1:2, :]
    a = jnp.maximum(hin_ref[...] * scale + shift, 0.0)     # f32 elementwise
    h = jnp.dot(a.astype(jnp.bfloat16), w_ref[...],
                preferred_element_type=jnp.float32)
    h_ref[...] = h
    st_ref[0] = _tile_stats(h, i, tb, b_total)


def bn_relu_fc_softmax_kernel(hin_ref, aff_ref, w_ref, out_ref, *, out_dim):
    """out = softmax(relu(hin*scale+shift) @ w + b) over first out_dim lanes."""
    scale = aff_ref[0:1, :]
    shift = aff_ref[1:2, :]
    bias = aff_ref[2:3, :]
    a = jnp.maximum(hin_ref[...] * scale + shift, 0.0)
    logits = jnp.dot(a.astype(jnp.bfloat16), w_ref[...],
                     preferred_element_type=jnp.float32) + bias
    lane = jax.lax.broadcasted_iota(jnp.int32, logits.shape, 1)
    logits = jnp.where(lane < out_dim, logits, NEG_BIG)    # mask pad lanes
    m = jnp.max(logits, axis=-1, keepdims=True)
    e = jnp.exp(logits - m)
    d = jnp.sum(e, axis=-1, keepdims=True)
    r = pl.reciprocal(d, approx=True)                      # EUP slot
    r = r * (2.0 - d * r)                                  # Newton -> ~f32
    out_ref[...] = (e * r).astype(out_ref.dtype)


# ---------------------------------------------------------------------------
# pallas_call wrappers
# ---------------------------------------------------------------------------

def _fc_stats(x, w, *, tb, b_total):
    b_pad, in_pad = x.shape
    nt = b_pad // tb
    kern = functools.partial(fc_stats_kernel, tb=tb, b_total=b_total)
    return pl.pallas_call(
        kern,
        out_shape=(jax.ShapeDtypeStruct((b_pad, LANES), jnp.float32),
                   jax.ShapeDtypeStruct((nt, 8, LANES), jnp.float32)),
        grid=(nt,),
        in_specs=[pl.BlockSpec((tb, in_pad), lambda i: (i, 0)),
                  pl.BlockSpec((in_pad, LANES), lambda i: (0, 0))],
        out_specs=(pl.BlockSpec((tb, LANES), lambda i: (i, 0)),
                   pl.BlockSpec((1, 8, LANES), lambda i: (i, 0, 0))),
        compiler_params=_CPARAMS,
    )(x, w)


def _bn_relu_fc_stats(hin, aff, w, *, tb, b_total):
    b_pad = hin.shape[0]
    nt = b_pad // tb
    kern = functools.partial(bn_relu_fc_stats_kernel, tb=tb, b_total=b_total)
    return pl.pallas_call(
        kern,
        out_shape=(jax.ShapeDtypeStruct((b_pad, LANES), jnp.float32),
                   jax.ShapeDtypeStruct((nt, 8, LANES), jnp.float32)),
        grid=(nt,),
        in_specs=[pl.BlockSpec((tb, LANES), lambda i: (i, 0)),
                  pl.BlockSpec((8, LANES), lambda i: (0, 0)),
                  pl.BlockSpec((LANES, LANES), lambda i: (0, 0))],
        out_specs=(pl.BlockSpec((tb, LANES), lambda i: (i, 0)),
                   pl.BlockSpec((1, 8, LANES), lambda i: (i, 0, 0))),
        compiler_params=_CPARAMS,
    )(hin, aff, w)


def _bn_relu_fc_softmax(hin, aff, w, *, tb, out_dim):
    b_pad = hin.shape[0]
    nt = b_pad // tb
    kern = functools.partial(bn_relu_fc_softmax_kernel, out_dim=out_dim)
    return pl.pallas_call(
        kern,
        out_shape=jax.ShapeDtypeStruct((b_pad, LANES), jnp.float32),
        grid=(nt,),
        in_specs=[pl.BlockSpec((tb, LANES), lambda i: (i, 0)),
                  pl.BlockSpec((8, LANES), lambda i: (0, 0)),
                  pl.BlockSpec((LANES, LANES), lambda i: (0, 0))],
        out_specs=pl.BlockSpec((tb, LANES), lambda i: (i, 0)),
        compiler_params=_CPARAMS,
    )(hin, aff, w)


def _bn_affine(stats_tiles, gamma, beta, b_total):
    """Fold full-batch training-mode BN into per-feature (scale, shift)."""
    st = jnp.sum(stats_tiles, axis=0)                         # (8, 128)
    mean = st[0:1, :] / b_total
    var = jnp.maximum(st[1:2, :] / b_total - mean * mean, 0.0)
    inv = jax.lax.rsqrt(var + BN_EPS)
    scale = _pad2(gamma, 1, LANES) * inv
    shift = _pad2(beta, 1, LANES) - mean * scale
    return jnp.concatenate([scale, shift], axis=0)            # (2, 128)


@jax.jit
def mlp_forward(x, params):
    """x: (B, input_dim) float32. Returns (B, output_dim) softmax probs."""
    B, input_dim = x.shape
    out_dim = params["w5"].shape[1]
    in_pad = _round_up(input_dim, LANES)

    tb = min(TB_DEFAULT, _round_up(B, 16))      # multiple of 16 (bf16 rows)
    b_pad = _round_up(B, tb)

    # bf16 at the boundary for x (halves input DMA; MXU consumes bf16 anyway);
    # intermediates stay f32 for exact BN statistics.
    x_pad = _pad2(x.astype(jnp.float32), b_pad, in_pad).astype(jnp.bfloat16)
    w1 = _pad2(params["w1"], in_pad, LANES).astype(jnp.bfloat16)
    w3 = _pad2(params["w3"], LANES, LANES).astype(jnp.bfloat16)
    w4 = _pad2(params["w4"], LANES, LANES).astype(jnp.bfloat16)
    w5 = _pad2(params["w5"], LANES, LANES).astype(jnp.bfloat16)
    b5 = _pad2(params["b5"], 1, LANES).astype(jnp.float32)
    zpad6 = jnp.zeros((6, LANES), jnp.float32)
    zpad5 = jnp.zeros((5, LANES), jnp.float32)

    # fc1/fc3/fc4 biases cancel in training-mode BN (h - mean) -> not passed.
    h1, st1 = _fc_stats(x_pad, w1, tb=tb, b_total=B)
    aff1 = jnp.concatenate(
        [_bn_affine(st1, params["g1"], params["be1"], B), zpad6], axis=0)

    h3, st3 = _bn_relu_fc_stats(h1, aff1, w3, tb=tb, b_total=B)
    aff3 = jnp.concatenate(
        [_bn_affine(st3, params["g3"], params["be3"], B), zpad6], axis=0)

    h4, st4 = _bn_relu_fc_stats(h3, aff3, w4, tb=tb, b_total=B)
    aff4 = jnp.concatenate(
        [_bn_affine(st4, params["g4"], params["be4"], B), b5, zpad5], axis=0)

    out = _bn_relu_fc_softmax(h4, aff4, w5, tb=tb, out_dim=out_dim)
    return out[:B, :out_dim]


# ---------------------------------------------------------------------------
# Params / reference / demo
# ---------------------------------------------------------------------------

def init_params(key, input_dim, output_dim):
    """Deterministic synthetic init. Linear weights stored as (in, out)
    (transposed from PyTorch's (out, in)); BN gamma=1, beta=0. fc1/fc3/fc4
    biases are kept for the pure-JAX reference but are not passed to the
    kernels (they cancel in training-mode BatchNorm)."""
    dims = [(input_dim, 64), (64, 32), (32, 16), (16, output_dim)]
    names = ["1", "3", "4", "5"]
    params = {}
    for (din, dout), n in zip(dims, names):
        key, kw, kb = jax.random.split(key, 3)
        bound = 1.0 / jnp.sqrt(din)
        params[f"w{n}"] = jax.random.uniform(
            kw, (din, dout), jnp.float32, -bound, bound)
        params[f"b{n}"] = jax.random.uniform(
            kb, (1, dout), jnp.float32, -bound, bound)
        if n != "5":  # BN layers follow fc1, fc3, fc4 only
            params[f"g{n}"] = jnp.ones((1, dout), jnp.float32)
            params[f"be{n}"] = jnp.zeros((1, dout), jnp.float32)
    return params


def mlp_reference(x, params):
    """Pure-JAX f32 reference, faithful to the PyTorch module (biases incl.)."""
    def bn_relu(h, g, b):
        mean = jnp.mean(h, axis=0, keepdims=True)
        var = jnp.mean((h - mean) ** 2, axis=0, keepdims=True)
        return jnp.maximum((h - mean) / jnp.sqrt(var + BN_EPS) * g + b, 0.0)

    h = bn_relu(x @ params["w1"] + params["b1"], params["g1"], params["be1"])
    h = bn_relu(h @ params["w3"] + params["b3"], params["g3"], params["be3"])
    h = bn_relu(h @ params["w4"] + params["b4"], params["g4"], params["be4"])
    logits = h @ params["w5"] + params["b5"]
    return jax.nn.softmax(logits, axis=1)


if __name__ == "__main__":
    key = jax.random.PRNGKey(0)
    batch, input_dim, output_dim = 8, 32, 10

    kx, kp = jax.random.split(key)
    x = jax.random.normal(kx, (batch, input_dim), jnp.float32)
    params = init_params(kp, input_dim, output_dim)

    out = jax.block_until_ready(mlp_forward(x, params))
    ref = mlp_reference(x, params)

    assert out.shape == (batch, output_dim)
    assert jnp.allclose(jnp.sum(out, axis=1), 1.0, atol=1e-5)
    # bf16 MXU inputs -> compare against the f32 reference at bf16 tolerance.
    assert jnp.allclose(out, ref, atol=3e-2, rtol=3e-2), float(
        jnp.max(jnp.abs(out - ref)))

    print("KERNEL_OK")
</pallas_src>

<mosaic_0001>
module attributes {stable_mosaic.version = 11 : i64} {
  func.func @fc_stats_kernel(%arg0: i32, %arg1: memref<16x128xbf16, #tpu.memory_space<vmem>>, %arg2: memref<128x128xbf16, #tpu.memory_space<vmem>>, %arg3: memref<16x128xf32, #tpu.memory_space<vmem>>, %arg4: memref<1x8x128xf32, #tpu.memory_space<vmem>>) attributes {dimension_semantics = [#tpu.dimension_semantics<parallel>], iteration_bounds = array<i64: 1>, scalar_prefetch = 0 : i64, scratch_operands = 0 : i64, tpu.core_type = #tpu.core_type<tc>, window_params = [{transform_indices = @transform_0, window_bounds = array<i64: 16, 128>}, {pipeline_mode = #tpu.pipeline_mode<synchronous>, transform_indices = @transform_1, window_bounds = array<i64: 128, 128>}, {transform_indices = @transform_2, window_bounds = array<i64: 16, 128>}, {transform_indices = @transform_3, window_bounds = array<i64: 1, 8, 128>}]} {
    %c0 = arith.constant 0 : index
    %c0_0 = arith.constant 0 : index
    %0 = vector.load %arg1[%c0, %c0_0] : memref<16x128xbf16, #tpu.memory_space<vmem>>, vector<16x128xbf16>
    %c0_1 = arith.constant 0 : index
    %c0_2 = arith.constant 0 : index
    %1 = vector.load %arg2[%c0_1, %c0_2] : memref<128x128xbf16, #tpu.memory_space<vmem>>, vector<128x128xbf16>
    %cst = arith.constant dense<0.000000e+00> : vector<16x128xf32>
    %2 = tpu.matmul %0, %1, %cst {dimension_numbers = #tpu.dot_dimension_numbers<[1], [0], [0], [1], [0, 0, 1, 1], [], []>} : vector<16x128xbf16>, vector<128x128xbf16>, vector<16x128xf32> -> vector<16x128xf32>
    %c0_3 = arith.constant 0 : index
    %c0_4 = arith.constant 0 : index
    %3 = vector.load %arg3[%c0_3, %c0_4] : memref<16x128xf32, #tpu.memory_space<vmem>>, vector<16x128xf32>
    tpu.vector_store %arg3[%c0_3, %c0_4], %2 {strides = array<i32>} : memref<16x128xf32, #tpu.memory_space<vmem>>, vector<16x128xf32>,
    %c16_i32 = arith.constant 16 : i32
    %4 = arith.muli %arg0, %c16_i32 : i32
    %c8_i32 = arith.constant 8 : i32
    %5 = arith.subi %c8_i32, %4 : i32
    %c16_i32_5 = arith.constant 16 : i32
    %6 = arith.minsi %5, %c16_i32_5 : i32
    %7 = tpu.iota {dimensions = array<i32: 0>} : vector<16x1xi32>
    %8 = vector.broadcast %6 : i32 to vector<16x1xi32>
    %9 = arith.cmpi slt, %7, %8 : vector<16x1xi32>
    %cst_6 = arith.constant 0.000000e+00 : f32
    %10 = vector.shape_cast %9 : vector<16x1xi1> to vector<16x1xi1>
    %11 = vector.broadcast %10 : vector<16x1xi1> to vector<16x128xi1>
    %12 = vector.broadcast %cst_6 : f32 to vector<16x128xf32>
    %13 = arith.select %11, %2, %12 : vector<16x128xi1>, vector<16x128xf32>
    %cst_7 = arith.constant dense<0.000000e+00> : vector<128xf32>
    %14 = vector.multi_reduction <add>, %13, %cst_7 [0] : vector<16x128xf32> to vector<128xf32>
    %15 = vector.shape_cast %14 : vector<128xf32> to vector<1x128xf32>
    %16 = arith.mulf %13, %13 : vector<16x128xf32>
    %cst_8 = arith.constant dense<0.000000e+00> : vector<128xf32>
    %17 = vector.multi_reduction <add>, %16, %cst_8 [0] : vector<16x128xf32> to vector<128xf32>
    %18 = vector.shape_cast %17 : vector<128xf32> to vector<1x128xf32>
    %cst_9 = arith.constant 0.000000e+00 : f32
    %19 = vector.broadcast %cst_9 : f32 to vector<6x128xf32>
    %20 = tpu.concatenate %15, %18, %19 in 0 : vector<1x128xf32>, vector<1x128xf32>, vector<6x128xf32> -> vector<8x128xf32>
    %c0_10 = arith.constant 0 : index
    %c0_11 = arith.constant 0 : index
    %c0_12 = arith.constant 0 : index
    %21 = vector.load %arg4[%c0_10, %c0_11, %c0_12] : memref<1x8x128xf32, #tpu.memory_space<vmem>>, vector<1x8x128xf32>
    %22 = vector.shape_cast %21 : vector<1x8x128xf32> to vector<8x128xf32>
    %23 = vector.shape_cast %20 : vector<8x128xf32> to vector<1x8x128xf32>
    tpu.vector_store %arg4[%c0_10, %c0_11, %c0_12], %23 {strides = array<i32>} : memref<1x8x128xf32, #tpu.memory_space<vmem>>, vector<1x8x128xf32>,
    return
  }
  func.func @transform_0(%arg0: i32) -> (i32, i32) {
    %c0_i32 = arith.constant 0 : i32
    %c0_i32_0 = arith.constant 0 : i32
    return %arg0, %c0_i32 : i32, i32
  }
  func.func @transform_1(%arg0: i32) -> (i32, i32) {
    %c0_i32 = arith.constant 0 : i32
    %c0_i32_0 = arith.constant 0 : i32
    %c0_i32_1 = arith.constant 0 : i32
    return %c0_i32, %c0_i32_0 : i32, i32
  }
  func.func @transform_2(%arg0: i32) -> (i32, i32) {
    %c0_i32 = arith.constant 0 : i32
    %c0_i32_0 = arith.constant 0 : i32
    return %arg0, %c0_i32 : i32, i32
  }
  func.func @transform_3(%arg0: i32) -> (i32, i32, i32) {
    %c0_i32 = arith.constant 0 : i32
    %c0_i32_0 = arith.constant 0 : i32
    %c0_i32_1 = arith.constant 0 : i32
    return %arg0, %c0_i32, %c0_i32_0 : i32, i32, i32
  }
}

module attributes {stable_mosaic.version = 11 : i64} {
  func.func @bn_relu_fc_stats_kernel(%arg0: i32, %arg1: memref<16x128xf32, #tpu.memory_space<vmem>>, %arg2: memref<8x128xf32, #tpu.memory_space<vmem>>, %arg3: memref<128x128xbf16, #tpu.memory_space<vmem>>, %arg4: memref<16x128xf32, #tpu.memory_space<vmem>>, %arg5: memref<1x8x128xf32, #tpu.memory_space<vmem>>) attributes {dimension_semantics = [#tpu.dimension_semantics<parallel>], iteration_bounds = array<i64: 1>, scalar_prefetch = 0 : i64, scratch_operands = 0 : i64, tpu.core_type = #tpu.core_type<tc>, window_params = [{transform_indices = @transform_0, window_bounds = array<i64: 16, 128>}, {pipeline_mode = #tpu.pipeline_mode<synchronous>, transform_indices = @transform_1, window_bounds = array<i64: 8, 128>}, {pipeline_mode = #tpu.pipeline_mode<synchronous>, transform_indices = @transform_2, window_bounds = array<i64: 128, 128>}, {transform_indices = @transform_3, window_bounds = array<i64: 16, 128>}, {transform_indices = @transform_4, window_bounds = array<i64: 1, 8, 128>}]} {
    %c0 = arith.constant 0 : index
    %c0_0 = arith.constant 0 : index
    %0 = vector.load %arg2[%c0, %c0_0] : memref<8x128xf32, #tpu.memory_space<vmem>>, vector<1x128xf32>
    %c1 = arith.constant 1 : index
    %c0_1 = arith.constant 0 : index
    %1 = vector.load %arg2[%c1, %c0_1] : memref<8x128xf32, #tpu.memory_space<vmem>>, vector<1x128xf32>
    %c0_2 = arith.constant 0 : index
    %c0_3 = arith.constant 0 : index
    %2 = vector.load %arg1[%c0_2, %c0_3] : memref<16x128xf32, #tpu.memory_space<vmem>>, vector<16x128xf32>
    %3 = vector.broadcast %0 : vector<1x128xf32> to vector<16x128xf32>
    %4 = arith.mulf %2, %3 : vector<16x128xf32>
    %5 = vector.broadcast %1 : vector<1x128xf32> to vector<16x128xf32>
    %6 = arith.addf %4, %5 : vector<16x128xf32>
    %cst = arith.constant 0.000000e+00 : f32
    %7 = vector.broadcast %cst : f32 to vector<16x128xf32>
    %8 = arith.maximumf %6, %7 : vector<16x128xf32>
    %9 = arith.truncf %8 : vector<16x128xf32> to vector<16x128xbf16>
    %c0_4 = arith.constant 0 : index
    %c0_5 = arith.constant 0 : index
    %10 = vector.load %arg3[%c0_4, %c0_5] : memref<128x128xbf16, #tpu.memory_space<vmem>>, vector<128x128xbf16>
    %cst_6 = arith.constant dense<0.000000e+00> : vector<16x128xf32>
    %11 = tpu.matmul %9, %10, %cst_6 {dimension_numbers = #tpu.dot_dimension_numbers<[1], [0], [0], [1], [0, 0, 1, 1], [], []>} : vector<16x128xbf16>, vector<128x128xbf16>, vector<16x128xf32> -> vector<16x128xf32>
    %c0_7 = arith.constant 0 : index
    %c0_8 = arith.constant 0 : index
    %12 = vector.load %arg4[%c0_7, %c0_8] : memref<16x128xf32, #tpu.memory_space<vmem>>, vector<16x128xf32>
    tpu.vector_store %arg4[%c0_7, %c0_8], %11 {strides = array<i32>} : memref<16x128xf32, #tpu.memory_space<vmem>>, vector<16x128xf32>,
    %c16_i32 = arith.constant 16 : i32
    %13 = arith.muli %arg0, %c16_i32 : i32
    %c8_i32 = arith.constant 8 : i32
    %14 = arith.subi %c8_i32, %13 : i32
    %c16_i32_9 = arith.constant 16 : i32
    %15 = arith.minsi %14, %c16_i32_9 : i32
    %16 = tpu.iota {dimensions = array<i32: 0>} : vector<16x1xi32>
    %17 = vector.broadcast %15 : i32 to vector<16x1xi32>
    %18 = arith.cmpi slt, %16, %17 : vector<16x1xi32>
    %cst_10 = arith.constant 0.000000e+00 : f32
    %19 = vector.shape_cast %18 : vector<16x1xi1> to vector<16x1xi1>
    %20 = vector.broadcast %19 : vector<16x1xi1> to vector<16x128xi1>
    %21 = vector.broadcast %cst_10 : f32 to vector<16x128xf32>
    %22 = arith.select %20, %11, %21 : vector<16x128xi1>, vector<16x128xf32>
    %cst_11 = arith.constant dense<0.000000e+00> : vector<128xf32>
    %23 = vector.multi_reduction <add>, %22, %cst_11 [0] : vector<16x128xf32> to vector<128xf32>
    %24 = vector.shape_cast %23 : vector<128xf32> to vector<1x128xf32>
    %25 = arith.mulf %22, %22 : vector<16x128xf32>
    %cst_12 = arith.constant dense<0.000000e+00> : vector<128xf32>
    %26 = vector.multi_reduction <add>, %25, %cst_12 [0] : vector<16x128xf32> to vector<128xf32>
    %27 = vector.shape_cast %26 : vector<128xf32> to vector<1x128xf32>
    %cst_13 = arith.constant 0.000000e+00 : f32
    %28 = vector.broadcast %cst_13 : f32 to vector<6x128xf32>
    %29 = tpu.concatenate %24, %27, %28 in 0 : vector<1x128xf32>, vector<1x128xf32>, vector<6x128xf32> -> vector<8x128xf32>
    %c0_14 = arith.constant 0 : index
    %c0_15 = arith.constant 0 : index
    %c0_16 = arith.constant 0 : index
    %30 = vector.load %arg5[%c0_14, %c0_15, %c0_16] : memref<1x8x128xf32, #tpu.memory_space<vmem>>, vector<1x8x128xf32>
    %31 = vector.shape_cast %30 : vector<1x8x128xf32> to vector<8x128xf32>
    %32 = vector.shape_cast %29 : vector<8x128xf32> to vector<1x8x128xf32>
    tpu.vector_store %arg5[%c0_14, %c0_15, %c0_16], %32 {strides = array<i32>} : memref<1x8x128xf32, #tpu.memory_space<vmem>>, vector<1x8x128xf32>,
    return
  }
  func.func @transform_0(%arg0: i32) -> (i32, i32) {
    %c0_i32 = arith.constant 0 : i32
    %c0_i32_0 = arith.constant 0 : i32
    return %arg0, %c0_i32 : i32, i32
  }
  func.func @transform_1(%arg0: i32) -> (i32, i32) {
    %c0_i32 = arith.constant 0 : i32
    %c0_i32_0 = arith.constant 0 : i32
    %c0_i32_1 = arith.constant 0 : i32
    return %c0_i32, %c0_i32_0 : i32, i32
  }
  func.func @transform_2(%arg0: i32) -> (i32, i32) {
    %c0_i32 = arith.constant 0 : i32
    %c0_i32_0 = arith.constant 0 : i32
    %c0_i32_1 = arith.constant 0 : i32
    return %c0_i32, %c0_i32_0 : i32, i32
  }
  func.func @transform_3(%arg0: i32) -> (i32, i32) {
    %c0_i32 = arith.constant 0 : i32
    %c0_i32_0 = arith.constant 0 : i32
    return %arg0, %c0_i32 : i32, i32
  }
  func.func @transform_4(%arg0: i32) -> (i32, i32, i32) {
    %c0_i32 = arith.constant 0 : i32
    %c0_i32_0 = arith.constant 0 : i32
    %c0_i32_1 = arith.constant 0 : i32
    return %arg0, %c0_i32, %c0_i32_0 : i32, i32, i32
  }
}

module attributes {stable_mosaic.version = 11 : i64} {
  func.func @bn_relu_fc_softmax_kernel(%arg0: i32, %arg1: memref<16x128xf32, #tpu.memory_space<vmem>>, %arg2: memref<8x128xf32, #tpu.memory_space<vmem>>, %arg3: memref<128x128xbf16, #tpu.memory_space<vmem>>, %arg4: memref<16x128xf32, #tpu.memory_space<vmem>>) attributes {dimension_semantics = [#tpu.dimension_semantics<parallel>], iteration_bounds = array<i64: 1>, scalar_prefetch = 0 : i64, scratch_operands = 0 : i64, tpu.core_type = #tpu.core_type<tc>, window_params = [{transform_indices = @transform_0, window_bounds = array<i64: 16, 128>}, {pipeline_mode = #tpu.pipeline_mode<synchronous>, transform_indices = @transform_1, window_bounds = array<i64: 8, 128>}, {pipeline_mode = #tpu.pipeline_mode<synchronous>, transform_indices = @transform_2, window_bounds = array<i64: 128, 128>}, {transform_indices = @transform_3, window_bounds = array<i64: 16, 128>}]} {
    %c0 = arith.constant 0 : index
    %c0_0 = arith.constant 0 : index
    %0 = vector.load %arg2[%c0, %c0_0] : memref<8x128xf32, #tpu.memory_space<vmem>>, vector<1x128xf32>
    %c1 = arith.constant 1 : index
    %c0_1 = arith.constant 0 : index
    %1 = vector.load %arg2[%c1, %c0_1] : memref<8x128xf32, #tpu.memory_space<vmem>>, vector<1x128xf32>
    %c2 = arith.constant 2 : index
    %c0_2 = arith.constant 0 : index
    %2 = vector.load %arg2[%c2, %c0_2] : memref<8x128xf32, #tpu.memory_space<vmem>>, vector<1x128xf32>
    %c0_3 = arith.constant 0 : index
    %c0_4 = arith.constant 0 : index
    %3 = vector.load %arg1[%c0_3, %c0_4] : memref<16x128xf32, #tpu.memory_space<vmem>>, vector<16x128xf32>
    %4 = vector.broadcast %0 : vector<1x128xf32> to vector<16x128xf32>
    %5 = arith.mulf %3, %4 : vector<16x128xf32>
    %6 = vector.broadcast %1 : vector<1x128xf32> to vector<16x128xf32>
    %7 = arith.addf %5, %6 : vector<16x128xf32>
    %cst = arith.constant 0.000000e+00 : f32
    %8 = vector.broadcast %cst : f32 to vector<16x128xf32>
    %9 = arith.maximumf %7, %8 : vector<16x128xf32>
    %10 = arith.truncf %9 : vector<16x128xf32> to vector<16x128xbf16>
    %c0_5 = arith.constant 0 : index
    %c0_6 = arith.constant 0 : index
    %11 = vector.load %arg3[%c0_5, %c0_6] : memref<128x128xbf16, #tpu.memory_space<vmem>>, vector<128x128xbf16>
    %cst_7 = arith.constant dense<0.000000e+00> : vector<16x128xf32>
    %12 = tpu.matmul %10, %11, %cst_7 {dimension_numbers = #tpu.dot_dimension_numbers<[1], [0], [0], [1], [0, 0, 1, 1], [], []>} : vector<16x128xbf16>, vector<128x128xbf16>, vector<16x128xf32> -> vector<16x128xf32>
    %13 = vector.broadcast %2 : vector<1x128xf32> to vector<16x128xf32>
    %14 = arith.addf %12, %13 : vector<16x128xf32>
    %15 = tpu.iota {dimensions = array<i32: 1>} : vector<16x128xi32>
    %c10_i32 = arith.constant 10 : i32
    %16 = vector.broadcast %c10_i32 : i32 to vector<16x128xi32>
    %17 = arith.cmpi slt, %15, %16 : vector<16x128xi32>
    %cst_8 = arith.constant -1.000000e+30 : f32
    %18 = vector.broadcast %cst_8 : f32 to vector<16x128xf32>
    %19 = arith.select %17, %14, %18 : vector<16x128xi1>, vector<16x128xf32>
    %cst_9 = arith.constant dense<0xFF800000> : vector<16xf32>
    %20 = vector.multi_reduction <maximumf>, %19, %cst_9 [1] : vector<16x128xf32> to vector<16xf32>
    %21 = vector.shape_cast %20 : vector<16xf32> to vector<16x1xf32>
    %22 = vector.broadcast %21 : vector<16x1xf32> to vector<16x128xf32>
    %23 = arith.subf %19, %22 : vector<16x128xf32>
    %24 = math.exp %23 : vector<16x128xf32>
    %cst_10 = arith.constant dense<0.000000e+00> : vector<16xf32>
    %25 = vector.multi_reduction <add>, %24, %cst_10 [1] : vector<16x128xf32> to vector<16xf32>
    %26 = vector.shape_cast %25 : vector<16xf32> to vector<16x1xf32>
    %27 = tpu.reciprocal %26 {approx = true} : vector<16x1xf32> -> vector<16x1xf32>
    %28 = arith.mulf %26, %27 : vector<16x1xf32>
    %cst_11 = arith.constant 2.000000e+00 : f32
    %29 = vector.broadcast %cst_11 : f32 to vector<16x1xf32>
    %30 = arith.subf %29, %28 : vector<16x1xf32>
    %31 = arith.mulf %27, %30 : vector<16x1xf32>
    %32 = vector.broadcast %31 : vector<16x1xf32> to vector<16x128xf32>
    %33 = arith.mulf %24, %32 : vector<16x128xf32>
    %c0_12 = arith.constant 0 : index
    %c0_13 = arith.constant 0 : index
    %34 = vector.load %arg4[%c0_12, %c0_13] : memref<16x128xf32, #tpu.memory_space<vmem>>, vector<16x128xf32>
    tpu.vector_store %arg4[%c0_12, %c0_13], %33 {strides = array<i32>} : memref<16x128xf32, #tpu.memory_space<vmem>>, vector<16x128xf32>,
    return
  }
  func.func @transform_0(%arg0: i32) -> (i32, i32) {
    %c0_i32 = arith.constant 0 : i32
    %c0_i32_0 = arith.constant 0 : i32
    return %arg0, %c0_i32 : i32, i32
  }
  func.func @transform_1(%arg0: i32) -> (i32, i32) {
    %c0_i32 = arith.constant 0 : i32
    %c0_i32_0 = arith.constant 0 : i32
    %c0_i32_1 = arith.constant 0 : i32
    return %c0_i32, %c0_i32_0 : i32, i32
  }
  func.func @transform_2(%arg0: i32) -> (i32, i32) {
    %c0_i32 = arith.constant 0 : i32
    %c0_i32_0 = arith.constant 0 : i32
    %c0_i32_1 = arith.constant 0 : i32
    return %c0_i32, %c0_i32_0 : i32, i32
  }
  func.func @transform_3(%arg0: i32) -> (i32, i32) {
    %c0_i32 = arith.constant 0 : i32
    %c0_i32_0 = arith.constant 0 : i32
    return %arg0, %c0_i32 : i32, i32
  }
}

</mosaic_0001>

<llo_original>
// kernel: mlp_forward.5
$region0: #{mlp_forward.5}
  #allocation0 [shape = 'u32[]', space=smem, size = 0x4, offset = 0x4, fixed_abs, tag = 'smem constant byte address 0x4 - core index']
  #allocation1 [shape = 'u32[144,128]{1,0:T(1,128)}', space=vmem, size = 0x12000, scoped, tag = 'internal scratch']
  %s0 = inlined_call_operand.vmem [shape: f32[16,128], index: 0, kind: input, shape index: {}]
  %s1 = inlined_call_operand.vmem [shape: f32[8,128], index: 1, kind: input, shape index: {}]
  %s2 = inlined_call_operand.vmem [shape: bf16[128,128], index: 2, kind: input, shape index: {}]
  %s3 = inlined_call_operand.vmem [shape: f32[16,128], index: 3, kind: output, shape index: {0}]
  %s4 = inlined_call_operand.vmem [shape: f32[1,8,128], index: 4, kind: output, shape index: {1}]
  %5 = xla_tuple %s3, %s4
  %s6 = sld [smem:[#allocation0]]
  $region30: #{mlp_forward.5} parent=0
    _
  %s8 = ssub.s32 1, %s6
  %s9 = scalar_select 0, %s8, %s6
  // Predicated region
  $region2: #{mlp_forward.5} parent=0 // pred_check
    _
  $region3: #{mlp_forward.5} parent=0 // pred_check_branch
    %11 = sbr.rel (0) target = $region5
  $region4: #{mlp_forward.5} parent=0 // pred_region
    _
  $region5: #{mlp_forward.5} parent=0 // pred_fallthru
    _
  // Predicated region
  $region6: #{mlp_forward.5} parent=0 // pred_check
    _
  $region7: #{mlp_forward.5} parent=0 // pred_check_branch
    %13 = sbr.rel (0) target = $region9
  $region8: #{mlp_forward.5} parent=0 // pred_region
    _
  $region9: #{mlp_forward.5} parent=0 // pred_fallthru
    _
  // Predicated region
  $region10: #{mlp_forward.5} parent=0 // pred_check
    _
  $region11: #{mlp_forward.5} parent=0 // pred_check_branch
    %15 = sbr.rel (0) target = $region13
  $region12: #{mlp_forward.5} parent=0 // pred_region
    _
  $region13: #{mlp_forward.5} parent=0 // pred_fallthru
    _
  %v17 = vld [vmem:[%s1] sm:$0x1]
  %v18 = vld [vmem:[%s1 + $0x1] sm:$0x1]
  %v19 = vld [vmem:[%s0] sm:$0xff]
  %v20 = vld [vmem:[%s0 + $0x8] sm:$0xff]
  %v21 = vlaneseq
  %v22 = vshrl.u32 %v21, 7
  %v23 = vsub.s32 0, %v22
  %v24 = vrot.slane %v17, %v23
  %v25 = vmul.f32 %v19, %v24
  %v26 = vmul.f32 %v20, %v24
  %v27 = vlaneseq
  %v28 = vshrl.u32 %v27, 7
  %v29 = vsub.s32 0, %v28
  %v30 = vrot.slane %v18, %v29
  %v31 = vadd.f32 %v25, %v30
  %v32 = vadd.f32 %v26, %v30
  %v33 = vmax.f32 %v31, 0.0
  %v34 = vmax.f32 %v32, 0.0
  %v35 = vpack.c.bf16 %v34, %v33
  %v36 = vld [vmem:[%s2] sm:$0xf]
  %v37 = vld [vmem:[%s2 + $0x4] sm:$0xf]
  %v38 = vld [vmem:[%s2 + $0x8] sm:$0xf]
  %v39 = vld [vmem:[%s2 + $0xc] sm:$0xf]
  %v40 = vld [vmem:[%s2 + $0x10] sm:$0xf]
  %v41 = vld [vmem:[%s2 + $0x14] sm:$0xf]
  %v42 = vld [vmem:[%s2 + $0x18] sm:$0xf]
  %v43 = vld [vmem:[%s2 + $0x1c] sm:$0xf]
  %v44 = vld [vmem:[%s2 + $0x20] sm:$0xf]
  %v45 = vld [vmem:[%s2 + $0x24] sm:$0xf]
  %v46 = vld [vmem:[%s2 + $0x28] sm:$0xf]
  %v47 = vld [vmem:[%s2 + $0x2c] sm:$0xf]
  %v48 = vld [vmem:[%s2 + $0x30] sm:$0xf]
  %v49 = vld [vmem:[%s2 + $0x34] sm:$0xf]
  %v50 = vld [vmem:[%s2 + $0x38] sm:$0xf]
  %v51 = vld [vmem:[%s2 + $0x3c] sm:$0xf]
  %v68 = vunpack.c.l.b16 %v36
  %v69 = vunpack.c.l.b16 %v37
  %v70 = vunpack.c.l.b16 %v38
  %v71 = vunpack.c.l.b16 %v39
  %v72 = vunpack.c.l.b16 %v40
  %v73 = vunpack.c.l.b16 %v41
  %v74 = vunpack.c.l.b16 %v42
  %v75 = vunpack.c.l.b16 %v43
  %v76 = vunpack.c.l.b16 %v44
  %v77 = vunpack.c.l.b16 %v45
  %v78 = vunpack.c.l.b16 %v46
  %v79 = vunpack.c.l.b16 %v47
  %v80 = vunpack.c.l.b16 %v48
  %v81 = vunpack.c.l.b16 %v49
  %v82 = vunpack.c.l.b16 %v50
  %v83 = vunpack.c.l.b16 %v51
  %v84 = vpack.c.b16 %v69, %v68
  %v85 = vpack.c.b16 %v71, %v70
  %v86 = vpack.c.b16 %v73, %v72
  %v87 = vpack.c.b16 %v75, %v74
  %v88 = vpack.c.b16 %v77, %v76
  %v89 = vpack.c.b16 %v79, %v78
  %v90 = vpack.c.b16 %v81, %v80
  %v91 = vpack.c.b16 %v83, %v82
  %100 = vmatprep.subr.bf16.mxu0 0
  %101 = vmatpush1.bf16.msra.mxu0 %v91
  %102 = vmatprep.subr.bf16.mxu0 0
  %103 = vmatpush1.bf16.msra.mxu0 %v90
  %104 = vmatprep.subr.bf16.mxu0 0
  %105 = vmatpush1.bf16.msra.mxu0 %v89
  %106 = vmatprep.subr.bf16.mxu0 0
  %107 = vmatpush1.bf16.msra.mxu0 %v88
  %108 = vmatprep.subr.bf16.mxu0 0
  %109 = vmatpush1.bf16.msra.mxu0 %v87
  %110 = vmatprep.subr.bf16.mxu0 0
  %111 = vmatpush1.bf16.msra.mxu0 %v86
  %112 = vmatprep.subr.bf16.mxu0 0
  %113 = vmatpush1.bf16.msra.mxu0 %v85
  %114 = vmatprep.subr.bf16.mxu0 0
  %115 = vmatpush1.bf16.msra.mxu0 %v84
  %116 = vmatprep.subr.bf16.mxu0 0
  %117 = vmatpush2.bf16.msra.mxu0 0
  %118 = vmatprep.subr.bf16.mxu0 0
  %119 = vmatpush2.bf16.msra.mxu0 0
  %120 = vmatprep.subr.bf16.mxu0 0
  %121 = vmatpush2.bf16.msra.mxu0 0
  %122 = vmatprep.subr.bf16.mxu0 0
  %123 = vmatpush2.bf16.msra.mxu0 0
  %124 = vmatprep.subr.bf16.mxu0 0
  %125 = vmatpush2.bf16.msra.mxu0 0
  %126 = vmatprep.subr.bf16.mxu0 0
  %127 = vmatpush2.bf16.msra.mxu0 0
  %128 = vmatprep.subr.bf16.mxu0 0
  %129 = vmatpush2.bf16.msra.mxu0 0
  %130 = vmatprep.subr.bf16.mxu0 0
  %131 = vmatpush2.bf16.msra.mxu0 0
  %132 = vmatprep.mubr.bf16.mxu0 0
  %133 = vmatmul.mubr.bf16.gmra.mxu0 %v35
  %v134 = vpop.f32.mrf.mxu0
  %v135 = vadd.f32 0.0, %v134
  %v136 = vpop.f32.mrf.mxu0
  %v137 = vpop.f32.mrf.mxu0
  %v138 = vadd.f32 0.0, %v137
  %v139 = vpop.f32.mrf.mxu0
  %140 = vdwg.mxu0
  %141 = vst [vmem:[%s3] sm:$0xff] %v135
  %142 = vst [vmem:[%s3 + $0x8] sm:$0xff] %v138
  %s143 = smul.u32 0, 16
  %s144 = ssub.s32 8, %s143
  %p145 = scmp.lt.s32.totalorder %s144, 16
  %s146 = scalar_select %p145, %s144, 16
  %v147 = vlaneseq
  %v148 = vshrl.u32 %v147, 7
  %v149 = vadd.s32 %v148, 8
  %v150 = vstv %s146
  %vm151 = vcmp.lt.s32.totalorder %v148, %v150
  %vm152 = vcmp.lt.s32.totalorder %v149, %v150
  %v153 = vsel %vm151, 1, 0
  %v154 = vsel %vm152, 1, 0
  %vm155 = vcmp.eq.s32.totalorder %v153, 1
  %vm156 = vcmp.eq.s32.totalorder %v154, 1
  %v157 = vsel %vm155, %v135, 0.0
  %v158 = vsel %vm156, %v138, 0.0
  %v159 = vadd.f32 %v157, %v158
  %v160 = vrot.slane %v159, 4
  %v161 = vadd.f32 %v159, %v160
  %v162 = vrot.slane %v161, 2
  %v163 = vadd.f32 %v161, %v162
  %v164 = vrot.slane %v163, 1
  %v165 = vadd.f32 %v163, %v164
  %v166 = vmul.f32 %v157, %v157
  %v167 = vmul.f32 %v158, %v158
  %v168 = vadd.f32 %v166, %v167
  %v169 = vrot.slane %v168, 4
  %v170 = vadd.f32 %v168, %v169
  %v171 = vrot.slane %v170, 2
  %v172 = vadd.f32 %v170, %v171
  %v173 = vrot.slane %v172, 1
  %v174 = vadd.f32 %v172, %v173
  %vm175 = vcmask 1040384
  %v176 = vsel %vm175, %v165, %v174
  %vm177 = vcmask 1041408
  %v178 = vsel %vm177, %v176, 0.0
  %179 = vst [vmem:[%s4] sm:$0xff] %v178
  // Predicated region
  $region14: #{mlp_forward.5} parent=0 // pred_check
    _
  $region15: #{mlp_forward.5} parent=0 // pred_check_branch
    %181 = sbr.rel (0) target = $region17
  $region16: #{mlp_forward.5} parent=0 // pred_region
    _
  $region17: #{mlp_forward.5} parent=0 // pred_fallthru
    _
  // Predicated region
  $region18: #{mlp_forward.5} parent=0 // pred_check
    _
  $region19: #{mlp_forward.5} parent=0 // pred_check_branch
    %183 = sbr.rel (0) target = $region21
  $region20: #{mlp_forward.5} parent=0 // pred_region
    _
  $region21: #{mlp_forward.5} parent=0 // pred_fallthru
    _
  // Predicated region
  $region22: #{mlp_forward.5} parent=0 // pred_check
    _
  $region23: #{mlp_forward.5} parent=0 // pred_check_branch
    %185 = sbr.rel (0) target = $region25
  $region24: #{mlp_forward.5} parent=0 // pred_region
    _
  $region25: #{mlp_forward.5} parent=0 // pred_fallthru
    _
  // Predicated region
  $region26: #{mlp_forward.5} parent=0 // pred_check
    _
  $region27: #{mlp_forward.5} parent=0 // pred_check_branch
    %187 = sbr.rel (0) target = $region29
  $region28: #{mlp_forward.5} parent=0 // pred_region
    _
  $region29: #{mlp_forward.5} parent=0 // pred_fallthru
    _

// kernel: mlp_forward.4
$region0: #{mlp_forward.4}
  #allocation0 [shape = 'u32[]', space=smem, size = 0x4, offset = 0x4, fixed_abs, tag = 'smem constant byte address 0x4 - core index']
  #allocation1 [shape = 'u32[144,128]{1,0:T(1,128)}', space=vmem, size = 0x12000, scoped, tag = 'internal scratch']
  %s0 = inlined_call_operand.vmem [shape: bf16[16,128], index: 0, kind: input, shape index: {}]
  %s1 = inlined_call_operand.vmem [shape: bf16[128,128], index: 1, kind: input, shape index: {}]
  %s2 = inlined_call_operand.vmem [shape: f32[16,128], index: 2, kind: output, shape index: {0}]
  %s3 = inlined_call_operand.vmem [shape: f32[1,8,128], index: 3, kind: output, shape index: {1}]
  %4 = xla_tuple %s2, %s3
  %s5 = sld [smem:[#allocation0]]
  $region26: #{mlp_forward.4} parent=0
    _
  %s7 = ssub.s32 1, %s5
  %s8 = scalar_select 0, %s7, %s5
  // Predicated region
  $region2: #{mlp_forward.4} parent=0 // pred_check
    _
  $region3: #{mlp_forward.4} parent=0 // pred_check_branch
    %10 = sbr.rel (0) target = $region5
  $region4: #{mlp_forward.4} parent=0 // pred_region
    _
  $region5: #{mlp_forward.4} parent=0 // pred_fallthru
    _
  // Predicated region
  $region6: #{mlp_forward.4} parent=0 // pred_check
    _
  $region7: #{mlp_forward.4} parent=0 // pred_check_branch
    %12 = sbr.rel (0) target = $region9
  $region8: #{mlp_forward.4} parent=0 // pred_region
    _
  $region9: #{mlp_forward.4} parent=0 // pred_fallthru
    _
  %v14 = vld [vmem:[%s0] sm:$0xf]
  %v15 = vld [vmem:[%s0 + $0x4] sm:$0xf]
  %v16 = vld [vmem:[%s1] sm:$0xf]
  %v17 = vld [vmem:[%s1 + $0x4] sm:$0xf]
  %v18 = vld [vmem:[%s1 + $0x8] sm:$0xf]
  %v19 = vld [vmem:[%s1 + $0xc] sm:$0xf]
  %v20 = vld [vmem:[%s1 + $0x10] sm:$0xf]
  %v21 = vld [vmem:[%s1 + $0x14] sm:$0xf]
  %v22 = vld [vmem:[%s1 + $0x18] sm:$0xf]
  %v23 = vld [vmem:[%s1 + $0x1c] sm:$0xf]
  %v24 = vld [vmem:[%s1 + $0x20] sm:$0xf]
  %v25 = vld [vmem:[%s1 + $0x24] sm:$0xf]
  %v26 = vld [vmem:[%s1 + $0x28] sm:$0xf]
  %v27 = vld [vmem:[%s1 + $0x2c] sm:$0xf]
  %v28 = vld [vmem:[%s1 + $0x30] sm:$0xf]
  %v29 = vld [vmem:[%s1 + $0x34] sm:$0xf]
  %v30 = vld [vmem:[%s1 + $0x38] sm:$0xf]
  %v31 = vld [vmem:[%s1 + $0x3c] sm:$0xf]
  %v34 = vunpack.c.l.b16 %v14
  %v35 = vunpack.c.l.b16 %v15
  %v36 = vpack.c.b16 %v35, %v34
  %v54 = vunpack.c.l.b16 %v16
  %v55 = vunpack.c.l.b16 %v17
  %v56 = vunpack.c.l.b16 %v18
  %v57 = vunpack.c.l.b16 %v19
  %v58 = vunpack.c.l.b16 %v20
  %v59 = vunpack.c.l.b16 %v21
  %v60 = vunpack.c.l.b16 %v22
  %v61 = vunpack.c.l.b16 %v23
  %v62 = vunpack.c.l.b16 %v24
  %v63 = vunpack.c.l.b16 %v25
  %v64 = vunpack.c.l.b16 %v26
  %v65 = vunpack.c.l.b16 %v27
  %v66 = vunpack.c.l.b16 %v28
  %v67 = vunpack.c.l.b16 %v29
  %v68 = vunpack.c.l.b16 %v30
  %v69 = vunpack.c.l.b16 %v31
  %v70 = vpack.c.b16 %v55, %v54
  %v71 = vpack.c.b16 %v57, %v56
  %v72 = vpack.c.b16 %v59, %v58
  %v73 = vpack.c.b16 %v61, %v60
  %v74 = vpack.c.b16 %v63, %v62
  %v75 = vpack.c.b16 %v65, %v64
  %v76 = vpack.c.b16 %v67, %v66
  %v77 = vpack.c.b16 %v69, %v68
  %86 = vmatprep.subr.bf16.mxu0 0
  %87 = vmatpush1.bf16.msra.mxu0 %v77
  %88 = vmatprep.subr.bf16.mxu0 0
  %89 = vmatpush1.bf16.msra.mxu0 %v76
  %90 = vmatprep.subr.bf16.mxu0 0
  %91 = vmatpush1.bf16.msra.mxu0 %v75
  %92 = vmatprep.subr.bf16.mxu0 0
  %93 = vmatpush1.bf16.msra.mxu0 %v74
  %94 = vmatprep.subr.bf16.mxu0 0
  %95 = vmatpush1.bf16.msra.mxu0 %v73
  %96 = vmatprep.subr.bf16.mxu0 0
  %97 = vmatpush1.bf16.msra.mxu0 %v72
  %98 = vmatprep.subr.bf16.mxu0 0
  %99 = vmatpush1.bf16.msra.mxu0 %v71
  %100 = vmatprep.subr.bf16.mxu0 0
  %101 = vmatpush1.bf16.msra.mxu0 %v70
  %102 = vmatprep.subr.bf16.mxu0 0
  %103 = vmatpush2.bf16.msra.mxu0 0
  %104 = vmatprep.subr.bf16.mxu0 0
  %105 = vmatpush2.bf16.msra.mxu0 0
  %106 = vmatprep.subr.bf16.mxu0 0
  %107 = vmatpush2.bf16.msra.mxu0 0
  %108 = vmatprep.subr.bf16.mxu0 0
  %109 = vmatpush2.bf16.msra.mxu0 0
  %110 = vmatprep.subr.bf16.mxu0 0
  %111 = vmatpush2.bf16.msra.mxu0 0
  %112 = vmatprep.subr.bf16.mxu0 0
  %113 = vmatpush2.bf16.msra.mxu0 0
  %114 = vmatprep.subr.bf16.mxu0 0
  %115 = vmatpush2.bf16.msra.mxu0 0
  %116 = vmatprep.subr.bf16.mxu0 0
  %117 = vmatpush2.bf16.msra.mxu0 0
  %118 = vmatprep.mubr.bf16.mxu0 0
  %119 = vmatmul.mubr.bf16.gmra.mxu0 %v36
  %v120 = vpop.f32.mrf.mxu0
  %v121 = vadd.f32 0.0, %v120
  %v122 = vpop.f32.mrf.mxu0
  %v123 = vpop.f32.mrf.mxu0
  %v124 = vadd.f32 0.0, %v123
  %v125 = vpop.f32.mrf.mxu0
  %126 = vdwg.mxu0
  %127 = vst [vmem:[%s2] sm:$0xff] %v121
  %128 = vst [vmem:[%s2 + $0x8] sm:$0xff] %v124
  %s129 = smul.u32 0, 16
  %s130 = ssub.s32 8, %s129
  %p131 = scmp.lt.s32.totalorder %s130, 16
  %s132 = scalar_select %p131, %s130, 16
  %v133 = vlaneseq
  %v134 = vshrl.u32 %v133, 7
  %v135 = vadd.s32 %v134, 8
  %v136 = vstv %s132
  %vm137 = vcmp.lt.s32.totalorder %v134, %v136
  %vm138 = vcmp.lt.s32.totalorder %v135, %v136
  %v139 = vsel %vm137, 1, 0
  %v140 = vsel %vm138, 1, 0
  %vm141 = vcmp.eq.s32.totalorder %v139, 1
  %vm142 = vcmp.eq.s32.totalorder %v140, 1
  %v143 = vsel %vm141, %v121, 0.0
  %v144 = vsel %vm142, %v124, 0.0
  %v145 = vadd.f32 %v143, %v144
  %v146 = vrot.slane %v145, 4
  %v147 = vadd.f32 %v145, %v146
  %v148 = vrot.slane %v147, 2
  %v149 = vadd.f32 %v147, %v148
  %v150 = vrot.slane %v149, 1
  %v151 = vadd.f32 %v149, %v150
  %v152 = vmul.f32 %v143, %v143
  %v153 = vmul.f32 %v144, %v144
  %v154 = vadd.f32 %v152, %v153
  %v155 = vrot.slane %v154, 4
  %v156 = vadd.f32 %v154, %v155
  %v157 = vrot.slane %v156, 2
  %v158 = vadd.f32 %v156, %v157
  %v159 = vrot.slane %v158, 1
  %v160 = vadd.f32 %v158, %v159
  %vm161 = vcmask 1040384
  %v162 = vsel %vm161, %v151, %v160
  %vm163 = vcmask 1041408
  %v164 = vsel %vm163, %v162, 0.0
  %165 = vst [vmem:[%s3] sm:$0xff] %v164
  // Predicated region
  $region10: #{mlp_forward.4} parent=0 // pred_check
    _
  $region11: #{mlp_forward.4} parent=0 // pred_check_branch
    %167 = sbr.rel (0) target = $region13
  $region12: #{mlp_forward.4} parent=0 // pred_region
    _
  $region13: #{mlp_forward.4} parent=0 // pred_fallthru
    _
  // Predicated region
  $region14: #{mlp_forward.4} parent=0 // pred_check
    _
  $region15: #{mlp_forward.4} parent=0 // pred_check_branch
    %169 = sbr.rel (0) target = $region17
  $region16: #{mlp_forward.4} parent=0 // pred_region
    _
  $region17: #{mlp_forward.4} parent=0 // pred_fallthru
    _
  // Predicated region
  $region18: #{mlp_forward.4} parent=0 // pred_check
    _
  $region19: #{mlp_forward.4} parent=0 // pred_check_branch
    %171 = sbr.rel (0) target = $region21
  $region20: #{mlp_forward.4} parent=0 // pred_region
    _
  $region21: #{mlp_forward.4} parent=0 // pred_fallthru
    _
  // Predicated region
  $region22: #{mlp_forward.4} parent=0 // pred_check
    _
  $region23: #{mlp_forward.4} parent=0 // pred_check_branch
    %173 = sbr.rel (0) target = $region25
  $region24: #{mlp_forward.4} parent=0 // pred_region
    _
  $region25: #{mlp_forward.4} parent=0 // pred_fallthru
    _

// kernel: mlp_forward.7
$region0: #{mlp_forward.7}
  #allocation0 [shape = 'u32[]', space=smem, size = 0x4, offset = 0x4, fixed_abs, tag = 'smem constant byte address 0x4 - core index']
  #allocation1 [shape = 'u32[144,128]{1,0:T(1,128)}', space=vmem, size = 0x12000, scoped, tag = 'internal scratch']
  %s0 = inlined_call_operand.vmem [shape: f32[16,128], index: 0, kind: input, shape index: {}]
  %s1 = inlined_call_operand.vmem [shape: f32[8,128], index: 1, kind: input, shape index: {}]
  %s2 = inlined_call_operand.vmem [shape: bf16[128,128], index: 2, kind: input, shape index: {}]
  %s3 = inlined_call_operand.vmem [shape: f32[16,128], index: 3, kind: output, shape index: {}]
  %s4 = sld [smem:[#allocation0]]
  $region22: #{mlp_forward.7} parent=0
    _
  %s6 = ssub.s32 1, %s4
  %s7 = scalar_select 0, %s6, %s4
  // Predicated region
  $region2: #{mlp_forward.7} parent=0 // pred_check
    _
  $region3: #{mlp_forward.7} parent=0 // pred_check_branch
    %9 = sbr.rel (0) target = $region5
  $region4: #{mlp_forward.7} parent=0 // pred_region
    _
  $region5: #{mlp_forward.7} parent=0 // pred_fallthru
    _
  // Predicated region
  $region6: #{mlp_forward.7} parent=0 // pred_check
    _
  $region7: #{mlp_forward.7} parent=0 // pred_check_branch
    %11 = sbr.rel (0) target = $region9
  $region8: #{mlp_forward.7} parent=0 // pred_region
    _
  $region9: #{mlp_forward.7} parent=0 // pred_fallthru
    _
  // Predicated region
  $region10: #{mlp_forward.7} parent=0 // pred_check
    _
  $region11: #{mlp_forward.7} parent=0 // pred_check_branch
    %13 = sbr.rel (0) target = $region13
  $region12: #{mlp_forward.7} parent=0 // pred_region
    _
  $region13: #{mlp_forward.7} parent=0 // pred_fallthru
    _
  %v15 = vld [vmem:[%s1] sm:$0x1]
  %v16 = vld [vmem:[%s1 + $0x1] sm:$0x1]
  %v17 = vld [vmem:[%s1 + $0x2] sm:$0x1]
  %v18 = vld [vmem:[%s0] sm:$0xff]
  %v19 = vld [vmem:[%s0 + $0x8] sm:$0xff]
  %v20 = vlaneseq
  %v21 = vshrl.u32 %v20, 7
  %v22 = vsub.s32 0, %v21
  %v23 = vrot.slane %v15, %v22
  %v24 = vmul.f32 %v18, %v23
  %v25 = vmul.f32 %v19, %v23
  %v26 = vlaneseq
  %v27 = vshrl.u32 %v26, 7
  %v28 = vsub.s32 0, %v27
  %v29 = vrot.slane %v16, %v28
  %v30 = vadd.f32 %v24, %v29
  %v31 = vadd.f32 %v25, %v29
  %v32 = vmax.f32 %v30, 0.0
  %v33 = vmax.f32 %v31, 0.0
  %v34 = vpack.c.bf16 %v33, %v32
  %v35 = vld [vmem:[%s2] sm:$0xf]
  %v36 = vld [vmem:[%s2 + $0x4] sm:$0xf]
  %v37 = vld [vmem:[%s2 + $0x8] sm:$0xf]
  %v38 = vld [vmem:[%s2 + $0xc] sm:$0xf]
  %v39 = vld [vmem:[%s2 + $0x10] sm:$0xf]
  %v40 = vld [vmem:[%s2 + $0x14] sm:$0xf]
  %v41 = vld [vmem:[%s2 + $0x18] sm:$0xf]
  %v42 = vld [vmem:[%s2 + $0x1c] sm:$0xf]
  %v43 = vld [vmem:[%s2 + $0x20] sm:$0xf]
  %v44 = vld [vmem:[%s2 + $0x24] sm:$0xf]
  %v45 = vld [vmem:[%s2 + $0x28] sm:$0xf]
  %v46 = vld [vmem:[%s2 + $0x2c] sm:$0xf]
  %v47 = vld [vmem:[%s2 + $0x30] sm:$0xf]
  %v48 = vld [vmem:[%s2 + $0x34] sm:$0xf]
  %v49 = vld [vmem:[%s2 + $0x38] sm:$0xf]
  %v50 = vld [vmem:[%s2 + $0x3c] sm:$0xf]
  %v51 = vlaneseq
  %v52 = vshrl.u32 %v51, 7
  %v53 = vsub.s32 0, %v52
  %v54 = vrot.slane %v17, %v53
  %v71 = vunpack.c.l.b16 %v35
  %v72 = vunpack.c.l.b16 %v36
  %v73 = vunpack.c.l.b16 %v37
  %v74 = vunpack.c.l.b16 %v38
  %v75 = vunpack.c.l.b16 %v39
  %v76 = vunpack.c.l.b16 %v40
  %v77 = vunpack.c.l.b16 %v41
  %v78 = vunpack.c.l.b16 %v42
  %v79 = vunpack.c.l.b16 %v43
  %v80 = vunpack.c.l.b16 %v44
  %v81 = vunpack.c.l.b16 %v45
  %v82 = vunpack.c.l.b16 %v46
  %v83 = vunpack.c.l.b16 %v47
  %v84 = vunpack.c.l.b16 %v48
  %v85 = vunpack.c.l.b16 %v49
  %v86 = vunpack.c.l.b16 %v50
  %v87 = vpack.c.b16 %v72, %v71
  %v88 = vpack.c.b16 %v74, %v73
  %v89 = vpack.c.b16 %v76, %v75
  %v90 = vpack.c.b16 %v78, %v77
  %v91 = vpack.c.b16 %v80, %v79
  %v92 = vpack.c.b16 %v82, %v81
  %v93 = vpack.c.b16 %v84, %v83
  %v94 = vpack.c.b16 %v86, %v85
  %103 = vmatprep.subr.bf16.mxu0 0
  %104 = vmatpush1.bf16.msra.mxu0 %v94
  %105 = vmatprep.subr.bf16.mxu0 0
  %106 = vmatpush1.bf16.msra.mxu0 %v93
  %107 = vmatprep.subr.bf16.mxu0 0
  %108 = vmatpush1.bf16.msra.mxu0 %v92
  %109 = vmatprep.subr.bf16.mxu0 0
  %110 = vmatpush1.bf16.msra.mxu0 %v91
  %111 = vmatprep.subr.bf16.mxu0 0
  %112 = vmatpush1.bf16.msra.mxu0 %v90
  %113 = vmatprep.subr.bf16.mxu0 0
  %114 = vmatpush1.bf16.msra.mxu0 %v89
  %115 = vmatprep.subr.bf16.mxu0 0
  %116 = vmatpush1.bf16.msra.mxu0 %v88
  %117 = vmatprep.subr.bf16.mxu0 0
  %118 = vmatpush1.bf16.msra.mxu0 %v87
  %119 = vmatprep.subr.bf16.mxu0 0
  %120 = vmatpush2.bf16.msra.mxu0 0
  %121 = vmatprep.subr.bf16.mxu0 0
  %122 = vmatpush2.bf16.msra.mxu0 0
  %123 = vmatprep.subr.bf16.mxu0 0
  %124 = vmatpush2.bf16.msra.mxu0 0
  %125 = vmatprep.subr.bf16.mxu0 0
  %126 = vmatpush2.bf16.msra.mxu0 0
  %127 = vmatprep.subr.bf16.mxu0 0
  %128 = vmatpush2.bf16.msra.mxu0 0
  %129 = vmatprep.subr.bf16.mxu0 0
  %130 = vmatpush2.bf16.msra.mxu0 0
  %131 = vmatprep.subr.bf16.mxu0 0
  %132 = vmatpush2.bf16.msra.mxu0 0
  %133 = vmatprep.subr.bf16.mxu0 0
  %134 = vmatpush2.bf16.msra.mxu0 0
  %135 = vmatprep.mubr.bf16.mxu0 0
  %136 = vmatmul.mubr.bf16.gmra.mxu0 %v34
  %v137 = vpop.f32.mrf.mxu0
  %v138 = vadd.f32 %v54, %v137
  %v139 = vpop.f32.mrf.mxu0
  %v140 = vpop.f32.mrf.mxu0
  %v141 = vadd.f32 %v54, %v140
  %v142 = vpop.f32.mrf.mxu0
  %143 = vdwg.mxu0
  %v144 = vlaneseq
  %v145 = vand.u32 %v144, 127
  %vm146 = vcmp.lt.s32.totalorder %v145, 10
  %v147 = vsel %vm146, %v138, -1e+30
  %v148 = vsel %vm146, %v141, -1e+30
  %149 = vmax.xlane.f32.xlu0 %v147
  %v150 = vpop.xlane.xlu0 %149
  %151 = vmax.xlane.f32.xlu0 %v148
  %v152 = vpop.xlane.xlu0 %151
  %v153 = vsub.f32 %v147, %v150
  %v154 = vsub.f32 %v148, %v152
  %v155 = vmul.f32 %v153, 1.442695
  %v156 = vpow.pop %v155
  %v157 = vmul.f32 %v154, 1.442695
  %v158 = vpow.pop %v157
  %159 = vadd.xlane.f32.xlu0 %v156
  %v160 = vpop.xlane.xlu0 %159
  %161 = vadd.xlane.f32.xlu0 %v158
  %v162 = vpop.xlane.xlu0 %161
  %v163 = vrcp.pop %v160
  %v164 = vrcp.pop %v162
  %v165 = vmul.f32 %v160, %v163
  %v166 = vmul.f32 %v162, %v164
  %v167 = vsub.f32 2.0, %v165
  %v168 = vsub.f32 2.0, %v166
  %v169 = vmul.f32 %v163, %v167
  %v170 = vmul.f32 %v164, %v168
  %v171 = vmul.f32 %v156, %v169
  %v172 = vmul.f32 %v158, %v170
  %173 = vst [vmem:[%s3] sm:$0xff] %v171
  %174 = vst [vmem:[%s3 + $0x8] sm:$0xff] %v172
  // Predicated region
  $region14: #{mlp_forward.7} parent=0 // pred_check
    _
  $region15: #{mlp_forward.7} parent=0 // pred_check_branch
    %176 = sbr.rel (0) target = $region17
  $region16: #{mlp_forward.7} parent=0 // pred_region
    _
  $region17: #{mlp_forward.7} parent=0 // pred_fallthru
    _
  // Predicated region
  $region18: #{mlp_forward.7} parent=0 // pred_check
    _
  $region19: #{mlp_forward.7} parent=0 // pred_check_branch
    %178 = sbr.rel (0) target = $region21
  $region20: #{mlp_forward.7} parent=0 // pred_region
    _
  $region21: #{mlp_forward.7} parent=0 // pred_fallthru
    _

</llo_original>
